<compile_context>
chip_gen: v6e
topology: v6e:2x2x1
jax: 0.10.0
libtpu: 0.0.40
codegen_flags: <defaults>
</compile_context>

<pallas_src>
import functools

import jax
import jax.numpy as jnp
from jax.experimental import pallas as pl
from jax.experimental.pallas import tpu as pltpu

LANES = 128  # lane width of a vreg; pad the output/class dim to this


def _linear_kernel(x_ref, w_ref, b_ref, o_ref):
    """Fused flatten->Linear: out = x @ W + b, f32 accumulation on the MXU.

    x_ref: (B, K)        flattened backbone features
    w_ref: (K, N_pad)    weight already transposed + lane-padded outside the hot path
    b_ref: (1, N_pad)    lane-padded bias row
    o_ref: (B, N_pad)    lane-dense output (unmasked stores)
    """
    out = jnp.dot(x_ref[...], w_ref[...], preferred_element_type=jnp.float32)
    o_ref[...] = (out + b_ref[...]).astype(o_ref.dtype)


def prepare_linear_params(weight, bias, lanes=LANES):
    """One-time (outside the hot path) re-layout of nn.Linear params.

    weight: (num_class, K)  nn.Linear convention
    bias:   (num_class,)
    returns (w_kn_padded (K, N_pad), bias_padded (1, N_pad))
    """
    num_class, k = weight.shape
    n_pad = ((num_class + lanes - 1) // lanes) * lanes
    n_pad = max(n_pad, lanes)
    w_kn = jnp.zeros((k, n_pad), dtype=weight.dtype).at[:, :num_class].set(weight.T)
    b_pad = jnp.zeros((1, n_pad), dtype=bias.dtype).at[0, :num_class].set(bias)
    return w_kn, b_pad


@functools.partial(jax.jit, static_argnames=("num_class",))
def net_linear_forward(x_nchw, w_kn_padded, bias_padded, *, num_class):
    """x_nchw:      (B, 2048, 1, 1) backbone features (what self.f(x) produces)
    w_kn_padded:    (2048, N_pad)   from prepare_linear_params
    bias_padded:    (1, N_pad)      from prepare_linear_params
    returns:        (B, num_class)
    """
    B = x_nchw.shape[0]
    # torch.flatten(x, start_dim=1): (B, 2048*1*1) = (B, 2048), row-major -> pure reshape.
    feat = x_nchw.reshape(B, -1)
    k = feat.shape[1]
    n_pad = w_kn_padded.shape[1]

    cost = pl.CostEstimate(
        flops=2 * B * k * n_pad,
        transcendentals=0,
        bytes_accessed=(B * k + k * n_pad + 2 * n_pad + B * n_pad) * 4,
    )

    # No grid: one kernel invocation, every operand resident whole-array in VMEM
    # (~140 KB total, trivially within VMEM on v5e/v6e/v7x).
    out_pad = pl.pallas_call(
        _linear_kernel,
        out_shape=jax.ShapeDtypeStruct((B, n_pad), feat.dtype),
        in_specs=[
            pl.BlockSpec(memory_space=pltpu.MemorySpace.VMEM),  # x (B, K)
            pl.BlockSpec(memory_space=pltpu.MemorySpace.VMEM),  # W (K, N_pad)
            pl.BlockSpec(memory_space=pltpu.MemorySpace.VMEM),  # bias (1, N_pad)
        ],
        out_specs=pl.BlockSpec(memory_space=pltpu.MemorySpace.VMEM),
        cost_estimate=cost,
    )(feat, w_kn_padded, bias_padded)

    return out_pad[:, :num_class]


if __name__ == "__main__":
    key = jax.random.PRNGKey(0)
    k_x, k_w, k_b = jax.random.split(key, 3)

    B = 2
    FEAT = 2048       # fixed by the module (Linear(2048, num_class))
    NUM_CLASS = 10

    # Synthetic backbone output (what self.f(x) would produce), NCHW (B, 2048, 1, 1).
    x = jax.random.normal(k_x, (B, FEAT, 1, 1), dtype=jnp.float32)

    # Deterministic nn.Linear-shaped parameters.
    weight = jax.random.normal(k_w, (NUM_CLASS, FEAT), dtype=jnp.float32) * 0.02
    bias = jax.random.normal(k_b, (NUM_CLASS,), dtype=jnp.float32) * 0.01

    # One-time parameter re-layout (outside the hot path).
    w_kn_padded, bias_padded = prepare_linear_params(weight, bias)

    out = net_linear_forward(x, w_kn_padded, bias_padded, num_class=NUM_CLASS)
    out = jax.block_until_ready(out)

    # Reference check against plain JAX (nn.Linear semantics).
    ref = x.reshape(B, -1) @ weight.T + bias
    assert out.shape == (B, NUM_CLASS)
    assert jnp.allclose(out, ref, atol=1e-4, rtol=1e-4), "mismatch vs reference"

    print("KERNEL_OK")
</pallas_src>

<mosaic_0001>
module attributes {stable_mosaic.version = 11 : i64} {
  func.func @_linear_kernel(%arg0: memref<2x2048xf32, #tpu.memory_space<vmem>>, %arg1: memref<2048x128xf32, #tpu.memory_space<vmem>>, %arg2: memref<1x128xf32, #tpu.memory_space<vmem>>, %arg3: memref<2x128xf32, #tpu.memory_space<vmem>>) attributes {dimension_semantics = [], scalar_prefetch = 0 : i64, scratch_operands = 0 : i64, tpu.core_type = #tpu.core_type<tc>} {
    %c0 = arith.constant 0 : index
    %c0_0 = arith.constant 0 : index
    %0 = vector.load %arg0[%c0, %c0_0] : memref<2x2048xf32, #tpu.memory_space<vmem>>, vector<2x2048xf32>
    %c0_1 = arith.constant 0 : index
    %c0_2 = arith.constant 0 : index
    %1 = vector.load %arg1[%c0_1, %c0_2] : memref<2048x128xf32, #tpu.memory_space<vmem>>, vector<2048x128xf32>
    %cst = arith.constant dense<0.000000e+00> : vector<2x128xf32>
    %2 = tpu.matmul %0, %1, %cst {dimension_numbers = #tpu.dot_dimension_numbers<[1], [0], [0], [1], [0, 0, 1, 1], [], []>} : vector<2x2048xf32>, vector<2048x128xf32>, vector<2x128xf32> -> vector<2x128xf32>
    %c0_3 = arith.constant 0 : index
    %c0_4 = arith.constant 0 : index
    %3 = vector.load %arg2[%c0_3, %c0_4] : memref<1x128xf32, #tpu.memory_space<vmem>>, vector<1x128xf32>
    %4 = vector.broadcast %3 : vector<1x128xf32> to vector<2x128xf32>
    %5 = arith.addf %2, %4 : vector<2x128xf32>
    %c0_5 = arith.constant 0 : index
    %c0_6 = arith.constant 0 : index
    %6 = vector.load %arg3[%c0_5, %c0_6] : memref<2x128xf32, #tpu.memory_space<vmem>>, vector<2x128xf32>
    tpu.vector_store %arg3[%c0_5, %c0_6], %5 {strides = array<i32>} : memref<2x128xf32, #tpu.memory_space<vmem>>, vector<2x128xf32>,
    return
  }
}

</mosaic_0001>

<llo_original>
// kernel: net_linear_forward.1
$region0: #{net_linear_forward.1}
  #allocation0 [shape = 'u32[]', space=smem, size = 0x4, offset = 0x4, fixed_abs, tag = 'smem constant byte address 0x4 - core index']
  #allocation1 [shape = 'u32[144,128]{1,0:T(1,128)}', space=vmem, size = 0x12000, scoped, tag = 'internal scratch']
  %s0 = inlined_call_operand.vmem [shape: f32[2,2048], index: 0, kind: input, shape index: {}]
  %s1 = inlined_call_operand.hbm [shape: f32[2048,128], index: 1, kind: input, shape index: {}]
  %s2 = inlined_call_operand.vmem [shape: f32[1,128], index: 2, kind: input, shape index: {}]
  %s3 = inlined_call_operand.hbm [shape: f32[2,128], index: 3, kind: output, shape index: {}]
  %s4 = sld [smem:[#allocation0]]
  $region26: #{net_linear_forward.1} parent=0
    _
  %s6 = ssub.s32 1, %s4
  %s7 = scalar_select 0, %s6, %s4
  $region1: #{net_linear_forward.1} parent=0
    #allocation2 [shape = 'u8[1048576]{0}', space=vmem, size = 0x100000, scoped, tag = 'input window, operand 1, single buffered']
    #allocation3 [shape = 's32[1]{0}', space=sflag, size = 0x4, scoped, tag = 'scoped memory for net_linear_forward.1']
    #allocation4 [shape = 's32[1]{0}', space=sflag, size = 0x4, scoped, tag = 'scoped memory for net_linear_forward.1']
    #allocation5 [shape = 'u8[1024]{0}', space=vmem, size = 0x400, scoped, tag = 'output window, operand 0, single buffered']
    %8 = vsyncpa [#allocation3], 0
    %9 = vsyncpa [#allocation4], 0
    // Predicated region
    $region2: #{net_linear_forward.1} parent=1 // pred_check
      _
    $region3: #{net_linear_forward.1} parent=1 // pred_check_branch
      %11 = sbr.rel (0) target = $region5
    $region4: #{net_linear_forward.1} parent=1 // pred_region
      _
    $region5: #{net_linear_forward.1} parent=1 // pred_fallthru
      _
    // Predicated region
    $region6: #{net_linear_forward.1} parent=1 // pred_check
      _
    $region7: #{net_linear_forward.1} parent=1 // pred_check_branch
      %13 = sbr.rel (0) target = $region9
    $region8: #{net_linear_forward.1} parent=1 // pred_region
      %s15 = ssub.s32 32768, 32768
      %16 = vsyncadd [#allocation3], %s15
      %s17 = sshll.u32 [#allocation2], 4
      %s18 = int_to_ptr.vmem [resolvable:$true] %s17
      %23 = dma.hbm_to_vmem [thread:$0]  %s1, 32768, %s18, [#allocation3], 128, 128, 8
    $region9: #{net_linear_forward.1} parent=1 // pred_fallthru
      _
    // Predicated region
    $region10: #{net_linear_forward.1} parent=1 // pred_check
      _
    $region11: #{net_linear_forward.1} parent=1 // pred_check_branch
      %25 = sbr.rel (0) target = $region13
    $region12: #{net_linear_forward.1} parent=1 // pred_region
      _
    $region13: #{net_linear_forward.1} parent=1 // pred_fallthru
      _
    // Predicated region
    $region14: #{net_linear_forward.1} parent=1 // pred_check
      _
    $region15: #{net_linear_forward.1} parent=1 // pred_check_branch
      %27 = sbr.rel (0) target = $region17
    $region16: #{net_linear_forward.1} parent=1 // pred_region
      %28 = dma.done [#allocation3], 32768
    $region17: #{net_linear_forward.1} parent=1 // pred_fallthru
      _
    %v29 = vld [vmem:[%s0] sm:$0xff]
    %v30 = vld [vmem:[%s0 + $0x8] sm:$0xff]
    %v31 = vld [vmem:[%s0 + $0x10] sm:$0xff]
    %v32 = vld [vmem:[%s0 + $0x18] sm:$0xff]
    %v33 = vld [vmem:[#allocation2] sm:$0xff]
    %v34 = vld [vmem:[#allocation2 + $0x8] sm:$0xff]
    %v35 = vld [vmem:[#allocation2 + $0x10] sm:$0xff]
    %v36 = vld [vmem:[#allocation2 + $0x18] sm:$0xff]
    %v37 = vld [vmem:[#allocation2 + $0x20] sm:$0xff]
    %v38 = vld [vmem:[#allocation2 + $0x28] sm:$0xff]
    %v39 = vld [vmem:[#allocation2 + $0x30] sm:$0xff]
    %v40 = vld [vmem:[#allocation2 + $0x38] sm:$0xff]
    %v41 = vld [vmem:[#allocation2 + $0x40] sm:$0xff]
    %v42 = vld [vmem:[#allocation2 + $0x48] sm:$0xff]
    %v43 = vld [vmem:[#allocation2 + $0x50] sm:$0xff]
    %v44 = vld [vmem:[#allocation2 + $0x58] sm:$0xff]
    %v45 = vld [vmem:[#allocation2 + $0x60] sm:$0xff]
    %v46 = vld [vmem:[#allocation2 + $0x68] sm:$0xff]
    %v47 = vld [vmem:[#allocation2 + $0x70] sm:$0xff]
    %v48 = vld [vmem:[#allocation2 + $0x78] sm:$0xff]
    %v49 = vld [vmem:[#allocation2 + $0x80] sm:$0xff]
    %v50 = vld [vmem:[#allocation2 + $0x88] sm:$0xff]
    %v51 = vld [vmem:[#allocation2 + $0x90] sm:$0xff]
    %v52 = vld [vmem:[#allocation2 + $0x98] sm:$0xff]
    %v53 = vld [vmem:[#allocation2 + $0xa0] sm:$0xff]
    %v54 = vld [vmem:[#allocation2 + $0xa8] sm:$0xff]
    %v55 = vld [vmem:[#allocation2 + $0xb0] sm:$0xff]
    %v56 = vld [vmem:[#allocation2 + $0xb8] sm:$0xff]
    %v57 = vld [vmem:[#allocation2 + $0xc0] sm:$0xff]
    %v58 = vld [vmem:[#allocation2 + $0xc8] sm:$0xff]
    %v59 = vld [vmem:[#allocation2 + $0xd0] sm:$0xff]
    %v60 = vld [vmem:[#allocation2 + $0xd8] sm:$0xff]
    %v61 = vld [vmem:[#allocation2 + $0xe0] sm:$0xff]
    %v62 = vld [vmem:[#allocation2 + $0xe8] sm:$0xff]
    %v63 = vld [vmem:[#allocation2 + $0xf0] sm:$0xff]
    %v64 = vld [vmem:[#allocation2 + $0xf8] sm:$0xff]
    %v65 = vld [vmem:[#allocation2 + $0x100] sm:$0xff]
    %v66 = vld [vmem:[#allocation2 + $0x108] sm:$0xff]
    %v67 = vld [vmem:[#allocation2 + $0x110] sm:$0xff]
    %v68 = vld [vmem:[#allocation2 + $0x118] sm:$0xff]
    %v69 = vld [vmem:[#allocation2 + $0x120] sm:$0xff]
    %v70 = vld [vmem:[#allocation2 + $0x128] sm:$0xff]
    %v71 = vld [vmem:[#allocation2 + $0x130] sm:$0xff]
    %v72 = vld [vmem:[#allocation2 + $0x138] sm:$0xff]
    %v73 = vld [vmem:[#allocation2 + $0x140] sm:$0xff]
    %v74 = vld [vmem:[#allocation2 + $0x148] sm:$0xff]
    %v75 = vld [vmem:[#allocation2 + $0x150] sm:$0xff]
    %v76 = vld [vmem:[#allocation2 + $0x158] sm:$0xff]
    %v77 = vld [vmem:[#allocation2 + $0x160] sm:$0xff]
    %v78 = vld [vmem:[#allocation2 + $0x168] sm:$0xff]
    %v79 = vld [vmem:[#allocation2 + $0x170] sm:$0xff]
    %v80 = vld [vmem:[#allocation2 + $0x178] sm:$0xff]
    %v81 = vld [vmem:[#allocation2 + $0x180] sm:$0xff]
    %v82 = vld [vmem:[#allocation2 + $0x188] sm:$0xff]
    %v83 = vld [vmem:[#allocation2 + $0x190] sm:$0xff]
    %v84 = vld [vmem:[#allocation2 + $0x198] sm:$0xff]
    %v85 = vld [vmem:[#allocation2 + $0x1a0] sm:$0xff]
    %v86 = vld [vmem:[#allocation2 + $0x1a8] sm:$0xff]
    %v87 = vld [vmem:[#allocation2 + $0x1b0] sm:$0xff]
    %v88 = vld [vmem:[#allocation2 + $0x1b8] sm:$0xff]
    %v89 = vld [vmem:[#allocation2 + $0x1c0] sm:$0xff]
    %v90 = vld [vmem:[#allocation2 + $0x1c8] sm:$0xff]
    %v91 = vld [vmem:[#allocation2 + $0x1d0] sm:$0xff]
    %v92 = vld [vmem:[#allocation2 + $0x1d8] sm:$0xff]
    %v93 = vld [vmem:[#allocation2 + $0x1e0] sm:$0xff]
    %v94 = vld [vmem:[#allocation2 + $0x1e8] sm:$0xff]
    %v95 = vld [vmem:[#allocation2 + $0x1f0] sm:$0xff]
    %v96 = vld [vmem:[#allocation2 + $0x1f8] sm:$0xff]
    %v97 = vld [vmem:[#allocation2 + $0x200] sm:$0xff]
    %v98 = vld [vmem:[#allocation2 + $0x208] sm:$0xff]
    %v99 = vld [vmem:[#allocation2 + $0x210] sm:$0xff]
    %v100 = vld [vmem:[#allocation2 + $0x218] sm:$0xff]
    %v101 = vld [vmem:[#allocation2 + $0x220] sm:$0xff]
    %v102 = vld [vmem:[#allocation2 + $0x228] sm:$0xff]
    %v103 = vld [vmem:[#allocation2 + $0x230] sm:$0xff]
    %v104 = vld [vmem:[#allocation2 + $0x238] sm:$0xff]
    %v105 = vld [vmem:[#allocation2 + $0x240] sm:$0xff]
    %v106 = vld [vmem:[#allocation2 + $0x248] sm:$0xff]
    %v107 = vld [vmem:[#allocation2 + $0x250] sm:$0xff]
    %v108 = vld [vmem:[#allocation2 + $0x258] sm:$0xff]
    %v109 = vld [vmem:[#allocation2 + $0x260] sm:$0xff]
    %v110 = vld [vmem:[#allocation2 + $0x268] sm:$0xff]
    %v111 = vld [vmem:[#allocation2 + $0x270] sm:$0xff]
    %v112 = vld [vmem:[#allocation2 + $0x278] sm:$0xff]
    %v113 = vld [vmem:[#allocation2 + $0x280] sm:$0xff]
    %v114 = vld [vmem:[#allocation2 + $0x288] sm:$0xff]
    %v115 = vld [vmem:[#allocation2 + $0x290] sm:$0xff]
    %v116 = vld [vmem:[#allocation2 + $0x298] sm:$0xff]
    %v117 = vld [vmem:[#allocation2 + $0x2a0] sm:$0xff]
    %v118 = vld [vmem:[#allocation2 + $0x2a8] sm:$0xff]
    %v119 = vld [vmem:[#allocation2 + $0x2b0] sm:$0xff]
    %v120 = vld [vmem:[#allocation2 + $0x2b8] sm:$0xff]
    %v121 = vld [vmem:[#allocation2 + $0x2c0] sm:$0xff]
    %v122 = vld [vmem:[#allocation2 + $0x2c8] sm:$0xff]
    %v123 = vld [vmem:[#allocation2 + $0x2d0] sm:$0xff]
    %v124 = vld [vmem:[#allocation2 + $0x2d8] sm:$0xff]
    %v125 = vld [vmem:[#allocation2 + $0x2e0] sm:$0xff]
    %v126 = vld [vmem:[#allocation2 + $0x2e8] sm:$0xff]
    %v127 = vld [vmem:[#allocation2 + $0x2f0] sm:$0xff]
    %v128 = vld [vmem:[#allocation2 + $0x2f8] sm:$0xff]
    %v129 = vld [vmem:[#allocation2 + $0x300] sm:$0xff]
    %v130 = vld [vmem:[#allocation2 + $0x308] sm:$0xff]
    %v131 = vld [vmem:[#allocation2 + $0x310] sm:$0xff]
    %v132 = vld [vmem:[#allocation2 + $0x318] sm:$0xff]
    %v133 = vld [vmem:[#allocation2 + $0x320] sm:$0xff]
    %v134 = vld [vmem:[#allocation2 + $0x328] sm:$0xff]
    %v135 = vld [vmem:[#allocation2 + $0x330] sm:$0xff]
    %v136 = vld [vmem:[#allocation2 + $0x338] sm:$0xff]
    %v137 = vld [vmem:[#allocation2 + $0x340] sm:$0xff]
    %v138 = vld [vmem:[#allocation2 + $0x348] sm:$0xff]
    %v139 = vld [vmem:[#allocation2 + $0x350] sm:$0xff]
    %v140 = vld [vmem:[#allocation2 + $0x358] sm:$0xff]
    %v141 = vld [vmem:[#allocation2 + $0x360] sm:$0xff]
    %v142 = vld [vmem:[#allocation2 + $0x368] sm:$0xff]
    %v143 = vld [vmem:[#allocation2 + $0x370] sm:$0xff]
    %v144 = vld [vmem:[#allocation2 + $0x378] sm:$0xff]
    %v145 = vld [vmem:[#allocation2 + $0x380] sm:$0xff]
    %v146 = vld [vmem:[#allocation2 + $0x388] sm:$0xff]
    %v147 = vld [vmem:[#allocation2 + $0x390] sm:$0xff]
    %v148 = vld [vmem:[#allocation2 + $0x398] sm:$0xff]
    %v149 = vld [vmem:[#allocation2 + $0x3a0] sm:$0xff]
    %v150 = vld [vmem:[#allocation2 + $0x3a8] sm:$0xff]
    %v151 = vld [vmem:[#allocation2 + $0x3b0] sm:$0xff]
    %v152 = vld [vmem:[#allocation2 + $0x3b8] sm:$0xff]
    %v153 = vld [vmem:[#allocation2 + $0x3c0] sm:$0xff]
    %v154 = vld [vmem:[#allocation2 + $0x3c8] sm:$0xff]
    %v155 = vld [vmem:[#allocation2 + $0x3d0] sm:$0xff]
    %v156 = vld [vmem:[#allocation2 + $0x3d8] sm:$0xff]
    %v157 = vld [vmem:[#allocation2 + $0x3e0] sm:$0xff]
    %v158 = vld [vmem:[#allocation2 + $0x3e8] sm:$0xff]
    %v159 = vld [vmem:[#allocation2 + $0x3f0] sm:$0xff]
    %v160 = vld [vmem:[#allocation2 + $0x3f8] sm:$0xff]
    %v161 = vld [vmem:[#allocation2 + $0x400] sm:$0xff]
    %v162 = vld [vmem:[#allocation2 + $0x408] sm:$0xff]
    %v163 = vld [vmem:[#allocation2 + $0x410] sm:$0xff]
    %v164 = vld [vmem:[#allocation2 + $0x418] sm:$0xff]
    %v165 = vld [vmem:[#allocation2 + $0x420] sm:$0xff]
    %v166 = vld [vmem:[#allocation2 + $0x428] sm:$0xff]
    %v167 = vld [vmem:[#allocation2 + $0x430] sm:$0xff]
    %v168 = vld [vmem:[#allocation2 + $0x438] sm:$0xff]
    %v169 = vld [vmem:[#allocation2 + $0x440] sm:$0xff]
    %v170 = vld [vmem:[#allocation2 + $0x448] sm:$0xff]
    %v171 = vld [vmem:[#allocation2 + $0x450] sm:$0xff]
    %v172 = vld [vmem:[#allocation2 + $0x458] sm:$0xff]
    %v173 = vld [vmem:[#allocation2 + $0x460] sm:$0xff]
    %v174 = vld [vmem:[#allocation2 + $0x468] sm:$0xff]
    %v175 = vld [vmem:[#allocation2 + $0x470] sm:$0xff]
    %v176 = vld [vmem:[#allocation2 + $0x478] sm:$0xff]
    %v177 = vld [vmem:[#allocation2 + $0x480] sm:$0xff]
    %v178 = vld [vmem:[#allocation2 + $0x488] sm:$0xff]
    %v179 = vld [vmem:[#allocation2 + $0x490] sm:$0xff]
    %v180 = vld [vmem:[#allocation2 + $0x498] sm:$0xff]
    %v181 = vld [vmem:[#allocation2 + $0x4a0] sm:$0xff]
    %v182 = vld [vmem:[#allocation2 + $0x4a8] sm:$0xff]
    %v183 = vld [vmem:[#allocation2 + $0x4b0] sm:$0xff]
    %v184 = vld [vmem:[#allocation2 + $0x4b8] sm:$0xff]
    %v185 = vld [vmem:[#allocation2 + $0x4c0] sm:$0xff]
    %v186 = vld [vmem:[#allocation2 + $0x4c8] sm:$0xff]
    %v187 = vld [vmem:[#allocation2 + $0x4d0] sm:$0xff]
    %v188 = vld [vmem:[#allocation2 + $0x4d8] sm:$0xff]
    %v189 = vld [vmem:[#allocation2 + $0x4e0] sm:$0xff]
    %v190 = vld [vmem:[#allocation2 + $0x4e8] sm:$0xff]
    %v191 = vld [vmem:[#allocation2 + $0x4f0] sm:$0xff]
    %v192 = vld [vmem:[#allocation2 + $0x4f8] sm:$0xff]
    %v193 = vld [vmem:[#allocation2 + $0x500] sm:$0xff]
    %v194 = vld [vmem:[#allocation2 + $0x508] sm:$0xff]
    %v195 = vld [vmem:[#allocation2 + $0x510] sm:$0xff]
    %v196 = vld [vmem:[#allocation2 + $0x518] sm:$0xff]
    %v197 = vld [vmem:[#allocation2 + $0x520] sm:$0xff]
    %v198 = vld [vmem:[#allocation2 + $0x528] sm:$0xff]
    %v199 = vld [vmem:[#allocation2 + $0x530] sm:$0xff]
    %v200 = vld [vmem:[#allocation2 + $0x538] sm:$0xff]
    %v201 = vld [vmem:[#allocation2 + $0x540] sm:$0xff]
    %v202 = vld [vmem:[#allocation2 + $0x548] sm:$0xff]
    %v203 = vld [vmem:[#allocation2 + $0x550] sm:$0xff]
    %v204 = vld [vmem:[#allocation2 + $0x558] sm:$0xff]
    %v205 = vld [vmem:[#allocation2 + $0x560] sm:$0xff]
    %v206 = vld [vmem:[#allocation2 + $0x568] sm:$0xff]
    %v207 = vld [vmem:[#allocation2 + $0x570] sm:$0xff]
    %v208 = vld [vmem:[#allocation2 + $0x578] sm:$0xff]
    %v209 = vld [vmem:[#allocation2 + $0x580] sm:$0xff]
    %v210 = vld [vmem:[#allocation2 + $0x588] sm:$0xff]
    %v211 = vld [vmem:[#allocation2 + $0x590] sm:$0xff]
    %v212 = vld [vmem:[#allocation2 + $0x598] sm:$0xff]
    %v213 = vld [vmem:[#allocation2 + $0x5a0] sm:$0xff]
    %v214 = vld [vmem:[#allocation2 + $0x5a8] sm:$0xff]
    %v215 = vld [vmem:[#allocation2 + $0x5b0] sm:$0xff]
    %v216 = vld [vmem:[#allocation2 + $0x5b8] sm:$0xff]
    %v217 = vld [vmem:[#allocation2 + $0x5c0] sm:$0xff]
    %v218 = vld [vmem:[#allocation2 + $0x5c8] sm:$0xff]
    %v219 = vld [vmem:[#allocation2 + $0x5d0] sm:$0xff]
    %v220 = vld [vmem:[#allocation2 + $0x5d8] sm:$0xff]
    %v221 = vld [vmem:[#allocation2 + $0x5e0] sm:$0xff]
    %v222 = vld [vmem:[#allocation2 + $0x5e8] sm:$0xff]
    %v223 = vld [vmem:[#allocation2 + $0x5f0] sm:$0xff]
    %v224 = vld [vmem:[#allocation2 + $0x5f8] sm:$0xff]
    %v225 = vld [vmem:[#allocation2 + $0x600] sm:$0xff]
    %v226 = vld [vmem:[#allocation2 + $0x608] sm:$0xff]
    %v227 = vld [vmem:[#allocation2 + $0x610] sm:$0xff]
    %v228 = vld [vmem:[#allocation2 + $0x618] sm:$0xff]
    %v229 = vld [vmem:[#allocation2 + $0x620] sm:$0xff]
    %v230 = vld [vmem:[#allocation2 + $0x628] sm:$0xff]
    %v231 = vld [vmem:[#allocation2 + $0x630] sm:$0xff]
    %v232 = vld [vmem:[#allocation2 + $0x638] sm:$0xff]
    %v233 = vld [vmem:[#allocation2 + $0x640] sm:$0xff]
    %v234 = vld [vmem:[#allocation2 + $0x648] sm:$0xff]
    %v235 = vld [vmem:[#allocation2 + $0x650] sm:$0xff]
    %v236 = vld [vmem:[#allocation2 + $0x658] sm:$0xff]
    %v237 = vld [vmem:[#allocation2 + $0x660] sm:$0xff]
    %v238 = vld [vmem:[#allocation2 + $0x668] sm:$0xff]
    %v239 = vld [vmem:[#allocation2 + $0x670] sm:$0xff]
    %v240 = vld [vmem:[#allocation2 + $0x678] sm:$0xff]
    %v241 = vld [vmem:[#allocation2 + $0x680] sm:$0xff]
    %v242 = vld [vmem:[#allocation2 + $0x688] sm:$0xff]
    %v243 = vld [vmem:[#allocation2 + $0x690] sm:$0xff]
    %v244 = vld [vmem:[#allocation2 + $0x698] sm:$0xff]
    %v245 = vld [vmem:[#allocation2 + $0x6a0] sm:$0xff]
    %v246 = vld [vmem:[#allocation2 + $0x6a8] sm:$0xff]
    %v247 = vld [vmem:[#allocation2 + $0x6b0] sm:$0xff]
    %v248 = vld [vmem:[#allocation2 + $0x6b8] sm:$0xff]
    %v249 = vld [vmem:[#allocation2 + $0x6c0] sm:$0xff]
    %v250 = vld [vmem:[#allocation2 + $0x6c8] sm:$0xff]
    %v251 = vld [vmem:[#allocation2 + $0x6d0] sm:$0xff]
    %v252 = vld [vmem:[#allocation2 + $0x6d8] sm:$0xff]
    %v253 = vld [vmem:[#allocation2 + $0x6e0] sm:$0xff]
    %v254 = vld [vmem:[#allocation2 + $0x6e8] sm:$0xff]
    %v255 = vld [vmem:[#allocation2 + $0x6f0] sm:$0xff]
    %v256 = vld [vmem:[#allocation2 + $0x6f8] sm:$0xff]
    %v257 = vld [vmem:[#allocation2 + $0x700] sm:$0xff]
    %v258 = vld [vmem:[#allocation2 + $0x708] sm:$0xff]
    %v259 = vld [vmem:[#allocation2 + $0x710] sm:$0xff]
    %v260 = vld [vmem:[#allocation2 + $0x718] sm:$0xff]
    %v261 = vld [vmem:[#allocation2 + $0x720] sm:$0xff]
    %v262 = vld [vmem:[#allocation2 + $0x728] sm:$0xff]
    %v263 = vld [vmem:[#allocation2 + $0x730] sm:$0xff]
    %v264 = vld [vmem:[#allocation2 + $0x738] sm:$0xff]
    %v265 = vld [vmem:[#allocation2 + $0x740] sm:$0xff]
    %v266 = vld [vmem:[#allocation2 + $0x748] sm:$0xff]
    %v267 = vld [vmem:[#allocation2 + $0x750] sm:$0xff]
    %v268 = vld [vmem:[#allocation2 + $0x758] sm:$0xff]
    %v269 = vld [vmem:[#allocation2 + $0x760] sm:$0xff]
    %v270 = vld [vmem:[#allocation2 + $0x768] sm:$0xff]
    %v271 = vld [vmem:[#allocation2 + $0x770] sm:$0xff]
    %v272 = vld [vmem:[#allocation2 + $0x778] sm:$0xff]
    %v273 = vld [vmem:[#allocation2 + $0x780] sm:$0xff]
    %v274 = vld [vmem:[#allocation2 + $0x788] sm:$0xff]
    %v275 = vld [vmem:[#allocation2 + $0x790] sm:$0xff]
    %v276 = vld [vmem:[#allocation2 + $0x798] sm:$0xff]
    %v277 = vld [vmem:[#allocation2 + $0x7a0] sm:$0xff]
    %v278 = vld [vmem:[#allocation2 + $0x7a8] sm:$0xff]
    %v279 = vld [vmem:[#allocation2 + $0x7b0] sm:$0xff]
    %v280 = vld [vmem:[#allocation2 + $0x7b8] sm:$0xff]
    %v281 = vld [vmem:[#allocation2 + $0x7c0] sm:$0xff]
    %v282 = vld [vmem:[#allocation2 + $0x7c8] sm:$0xff]
    %v283 = vld [vmem:[#allocation2 + $0x7d0] sm:$0xff]
    %v284 = vld [vmem:[#allocation2 + $0x7d8] sm:$0xff]
    %v285 = vld [vmem:[#allocation2 + $0x7e0] sm:$0xff]
    %v286 = vld [vmem:[#allocation2 + $0x7e8] sm:$0xff]
    %v287 = vld [vmem:[#allocation2 + $0x7f0] sm:$0xff]
    %v288 = vld [vmem:[#allocation2 + $0x7f8] sm:$0xff]
    %v289 = vld [vmem:[%s2] sm:$0x1]
    %v291 = vlaneseq
    %v292 = vshrl.u32 %v291, 7
    %v293 = vsub.s32 0, %v292
    %v294 = vrot.slane %v289, %v293
    %v300 = vcombine.high %v29, %v29
    %v302 = vunpack.c.l.s4 1983009808
    %v303 = vunpack.c.0.s8 %v302
    %v304 = vlaneseq
    %v305 = vshrl.u32 %v304, 7
    %v306 = vsub.s32 %v303, %v305
    %v307 = vrot.slane %v29, %v306
    %v309 = vunpack.c.l.s4 1983009808
    %v310 = vunpack.c.0.s8 %v309
    %v311 = vlaneseq
    %v312 = vshrl.u32 %v311, 7
    %v313 = vsub.s32 %v310, %v312
    %v314 = vrot.slane %v300, %v313
    %v315 = vcombine.high %v307, %v307
    %v316 = vcombine.high %v314, %v314
    %v317 = vcombine.high %v30, %v30
    %v319 = vunpack.c.l.s4 1983009808
    %v320 = vunpack.c.0.s8 %v319
    %v321 = vlaneseq
    %v322 = vshrl.u32 %v321, 7
    %v323 = vsub.s32 %v320, %v322
    %v324 = vrot.slane %v30, %v323
    %v326 = vunpack.c.l.s4 1983009808
    %v327 = vunpack.c.0.s8 %v326
    %v328 = vlaneseq
    %v329 = vshrl.u32 %v328, 7
    %v330 = vsub.s32 %v327, %v329
    %v331 = vrot.slane %v317, %v330
    %v332 = vcombine.high %v324, %v324
    %v333 = vcombine.high %v331, %v331
    %v334 = vcombine.high %v31, %v31
    %v336 = vunpack.c.l.s4 1983009808
    %v337 = vunpack.c.0.s8 %v336
    %v338 = vlaneseq
    %v339 = vshrl.u32 %v338, 7
    %v340 = vsub.s32 %v337, %v339
    %v341 = vrot.slane %v31, %v340
    %v343 = vunpack.c.l.s4 1983009808
    %v344 = vunpack.c.0.s8 %v343
    %v345 = vlaneseq
    %v346 = vshrl.u32 %v345, 7
    %v347 = vsub.s32 %v344, %v346
    %v348 = vrot.slane %v334, %v347
    %v349 = vcombine.high %v341, %v341
    %v350 = vcombine.high %v348, %v348
    %v351 = vcombine.high %v32, %v32
    %v353 = vunpack.c.l.s4 1983009808
    %v354 = vunpack.c.0.s8 %v353
    %v355 = vlaneseq
    %v356 = vshrl.u32 %v355, 7
    %v357 = vsub.s32 %v354, %v356
    %v358 = vrot.slane %v32, %v357
    %v360 = vunpack.c.l.s4 1983009808
    %v361 = vunpack.c.0.s8 %v360
    %v362 = vlaneseq
    %v363 = vshrl.u32 %v362, 7
    %v364 = vsub.s32 %v361, %v363
    %v365 = vrot.slane %v351, %v364
    %v366 = vcombine.high %v358, %v358
    %v367 = vcombine.high %v365, %v365
    %384 = vmatprep.subr.mxu0 0.0
    %385 = vmatpush1.msra.mxu0 %v48
    %386 = vmatprep.subr.mxu0 0.0
    %387 = vmatpush1.msra.mxu0 %v47
    %388 = vmatprep.subr.mxu0 0.0
    %389 = vmatpush1.msra.mxu0 %v46
    %390 = vmatprep.subr.mxu0 0.0
    %391 = vmatpush1.msra.mxu0 %v45
    %392 = vmatprep.subr.mxu0 0.0
    %393 = vmatpush1.msra.mxu0 %v44
    %394 = vmatprep.subr.mxu0 0.0
    %395 = vmatpush1.msra.mxu0 %v43
    %396 = vmatprep.subr.mxu0 0.0
    %397 = vmatpush1.msra.mxu0 %v42
    %398 = vmatprep.subr.mxu0 0.0
    %399 = vmatpush1.msra.mxu0 %v41
    %400 = vmatprep.subr.mxu0 0.0
    %401 = vmatpush1.msra.mxu0 %v40
    %402 = vmatprep.subr.mxu0 0.0
    %403 = vmatpush1.msra.mxu0 %v39
    %404 = vmatprep.subr.mxu0 0.0
    %405 = vmatpush1.msra.mxu0 %v38
    %406 = vmatprep.subr.mxu0 0.0
    %407 = vmatpush1.msra.mxu0 %v37
    %408 = vmatprep.subr.mxu0 0.0
    %409 = vmatpush1.msra.mxu0 %v36
    %410 = vmatprep.subr.mxu0 0.0
    %411 = vmatpush1.msra.mxu0 %v35
    %412 = vmatprep.subr.mxu0 0.0
    %413 = vmatpush1.msra.mxu0 %v34
    %414 = vmatprep.subr.mxu0 0.0
    %415 = vmatpush1.msra.mxu0 %v33
    %416 = vmatprep.subr.mxu0 0.0
    %417 = vmatpush2.msra.mxu0 %v64
    %418 = vmatprep.subr.mxu0 0.0
    %419 = vmatpush2.msra.mxu0 %v63
    %420 = vmatprep.subr.mxu0 0.0
    %421 = vmatpush2.msra.mxu0 %v62
    %422 = vmatprep.subr.mxu0 0.0
    %423 = vmatpush2.msra.mxu0 %v61
    %424 = vmatprep.subr.mxu0 0.0
    %425 = vmatpush2.msra.mxu0 %v60
    %426 = vmatprep.subr.mxu0 0.0
    %427 = vmatpush2.msra.mxu0 %v59
    %428 = vmatprep.subr.mxu0 0.0
    %429 = vmatpush2.msra.mxu0 %v58
    %430 = vmatprep.subr.mxu0 0.0
    %431 = vmatpush2.msra.mxu0 %v57
    %432 = vmatprep.subr.mxu0 0.0
    %433 = vmatpush2.msra.mxu0 %v56
    %434 = vmatprep.subr.mxu0 0.0
    %435 = vmatpush2.msra.mxu0 %v55
    %436 = vmatprep.subr.mxu0 0.0
    %437 = vmatpush2.msra.mxu0 %v54
    %438 = vmatprep.subr.mxu0 0.0
    %439 = vmatpush2.msra.mxu0 %v53
    %440 = vmatprep.subr.mxu0 0.0
    %441 = vmatpush2.msra.mxu0 %v52
    %442 = vmatprep.subr.mxu0 0.0
    %443 = vmatpush2.msra.mxu0 %v51
    %444 = vmatprep.subr.mxu0 0.0
    %445 = vmatpush2.msra.mxu0 %v50
    %446 = vmatprep.subr.mxu0 0.0
    %447 = vmatpush2.msra.mxu0 %v49
    %448 = vmatprep.mubr.f32.mxu0 %v315
    %449 = vmatmul.mubr.f32.gmra.mxu0 %v307
    %v450 = vpop.f32.mrf.mxu0
    %v451 = vadd.f32 %v294, %v450
    %v452 = vpop.f32.mrf.mxu0
    %453 = vdwg.mxu0
    %454 = vmatprep.subr.mxu0 0.0
    %455 = vmatpush1.msra.mxu0 %v80
    %456 = vmatprep.subr.mxu0 0.0
    %457 = vmatpush1.msra.mxu0 %v79
    %458 = vmatprep.subr.mxu0 0.0
    %459 = vmatpush1.msra.mxu0 %v78
    %460 = vmatprep.subr.mxu0 0.0
    %461 = vmatpush1.msra.mxu0 %v77
    %462 = vmatprep.subr.mxu0 0.0
    %463 = vmatpush1.msra.mxu0 %v76
    %464 = vmatprep.subr.mxu0 0.0
    %465 = vmatpush1.msra.mxu0 %v75
    %466 = vmatprep.subr.mxu0 0.0
    %467 = vmatpush1.msra.mxu0 %v74
    %468 = vmatprep.subr.mxu0 0.0
    %469 = vmatpush1.msra.mxu0 %v73
    %470 = vmatprep.subr.mxu0 0.0
    %471 = vmatpush1.msra.mxu0 %v72
    %472 = vmatprep.subr.mxu0 0.0
    %473 = vmatpush1.msra.mxu0 %v71
    %474 = vmatprep.subr.mxu0 0.0
    %475 = vmatpush1.msra.mxu0 %v70
    %476 = vmatprep.subr.mxu0 0.0
    %477 = vmatpush1.msra.mxu0 %v69
    %478 = vmatprep.subr.mxu0 0.0
    %479 = vmatpush1.msra.mxu0 %v68
    %480 = vmatprep.subr.mxu0 0.0
    %481 = vmatpush1.msra.mxu0 %v67
    %482 = vmatprep.subr.mxu0 0.0
    %483 = vmatpush1.msra.mxu0 %v66
    %484 = vmatprep.subr.mxu0 0.0
    %485 = vmatpush1.msra.mxu0 %v65
    %486 = vmatprep.subr.mxu0 0.0
    %487 = vmatpush2.msra.mxu0 %v96
    %488 = vmatprep.subr.mxu0 0.0
    %489 = vmatpush2.msra.mxu0 %v95
    %490 = vmatprep.subr.mxu0 0.0
    %491 = vmatpush2.msra.mxu0 %v94
    %492 = vmatprep.subr.mxu0 0.0
    %493 = vmatpush2.msra.mxu0 %v93
    %494 = vmatprep.subr.mxu0 0.0
    %495 = vmatpush2.msra.mxu0 %v92
    %496 = vmatprep.subr.mxu0 0.0
    %497 = vmatpush2.msra.mxu0 %v91
    %498 = vmatprep.subr.mxu0 0.0
    %499 = vmatpush2.msra.mxu0 %v90
    %500 = vmatprep.subr.mxu0 0.0
    %501 = vmatpush2.msra.mxu0 %v89
    %502 = vmatprep.subr.mxu0 0.0
    %503 = vmatpush2.msra.mxu0 %v88
    %504 = vmatprep.subr.mxu0 0.0
    %505 = vmatpush2.msra.mxu0 %v87
    %506 = vmatprep.subr.mxu0 0.0
    %507 = vmatpush2.msra.mxu0 %v86
    %508 = vmatprep.subr.mxu0 0.0
    %509 = vmatpush2.msra.mxu0 %v85
    %510 = vmatprep.subr.mxu0 0.0
    %511 = vmatpush2.msra.mxu0 %v84
    %512 = vmatprep.subr.mxu0 0.0
    %513 = vmatpush2.msra.mxu0 %v83
    %514 = vmatprep.subr.mxu0 0.0
    %515 = vmatpush2.msra.mxu0 %v82
    %516 = vmatprep.subr.mxu0 0.0
    %517 = vmatpush2.msra.mxu0 %v81
    %518 = vmatprep.mubr.f32.mxu0 %v316
    %519 = vmatmul.mubr.f32.gmra.mxu0 %v314
    %v520 = vpop.f32.mrf.mxu0
    %v521 = vadd.f32 %v451, %v520
    %v522 = vpop.f32.mrf.mxu0
    %523 = vdwg.mxu0
    %524 = vmatprep.subr.mxu0 0.0
    %525 = vmatpush1.msra.mxu0 %v112
    %526 = vmatprep.subr.mxu0 0.0
    %527 = vmatpush1.msra.mxu0 %v111
    %528 = vmatprep.subr.mxu0 0.0
    %529 = vmatpush1.msra.mxu0 %v110
    %530 = vmatprep.subr.mxu0 0.0
    %531 = vmatpush1.msra.mxu0 %v109
    %532 = vmatprep.subr.mxu0 0.0
    %533 = vmatpush1.msra.mxu0 %v108
    %534 = vmatprep.subr.mxu0 0.0
    %535 = vmatpush1.msra.mxu0 %v107
    %536 = vmatprep.subr.mxu0 0.0
    %537 = vmatpush1.msra.mxu0 %v106
    %538 = vmatprep.subr.mxu0 0.0
    %539 = vmatpush1.msra.mxu0 %v105
    %540 = vmatprep.subr.mxu0 0.0
    %541 = vmatpush1.msra.mxu0 %v104
    %542 = vmatprep.subr.mxu0 0.0
    %543 = vmatpush1.msra.mxu0 %v103
    %544 = vmatprep.subr.mxu0 0.0
    %545 = vmatpush1.msra.mxu0 %v102
    %546 = vmatprep.subr.mxu0 0.0
    %547 = vmatpush1.msra.mxu0 %v101
    %548 = vmatprep.subr.mxu0 0.0
    %549 = vmatpush1.msra.mxu0 %v100
    %550 = vmatprep.subr.mxu0 0.0
    %551 = vmatpush1.msra.mxu0 %v99
    %552 = vmatprep.subr.mxu0 0.0
    %553 = vmatpush1.msra.mxu0 %v98
    %554 = vmatprep.subr.mxu0 0.0
    %555 = vmatpush1.msra.mxu0 %v97
    %556 = vmatprep.subr.mxu0 0.0
    %557 = vmatpush2.msra.mxu0 %v128
    %558 = vmatprep.subr.mxu0 0.0
    %559 = vmatpush2.msra.mxu0 %v127
    %560 = vmatprep.subr.mxu0 0.0
    %561 = vmatpush2.msra.mxu0 %v126
    %562 = vmatprep.subr.mxu0 0.0
    %563 = vmatpush2.msra.mxu0 %v125
    %564 = vmatprep.subr.mxu0 0.0
    %565 = vmatpush2.msra.mxu0 %v124
    %566 = vmatprep.subr.mxu0 0.0
    %567 = vmatpush2.msra.mxu0 %v123
    %568 = vmatprep.subr.mxu0 0.0
    %569 = vmatpush2.msra.mxu0 %v122
    %570 = vmatprep.subr.mxu0 0.0
    %571 = vmatpush2.msra.mxu0 %v121
    %572 = vmatprep.subr.mxu0 0.0
    %573 = vmatpush2.msra.mxu0 %v120
    %574 = vmatprep.subr.mxu0 0.0
    %575 = vmatpush2.msra.mxu0 %v119
    %576 = vmatprep.subr.mxu0 0.0
    %577 = vmatpush2.msra.mxu0 %v118
    %578 = vmatprep.subr.mxu0 0.0
    %579 = vmatpush2.msra.mxu0 %v117
    %580 = vmatprep.subr.mxu0 0.0
    %581 = vmatpush2.msra.mxu0 %v116
    %582 = vmatprep.subr.mxu0 0.0
    %583 = vmatpush2.msra.mxu0 %v115
    %584 = vmatprep.subr.mxu0 0.0
    %585 = vmatpush2.msra.mxu0 %v114
    %586 = vmatprep.subr.mxu0 0.0
    %587 = vmatpush2.msra.mxu0 %v113
    %588 = vmatprep.mubr.f32.mxu0 %v332
    %589 = vmatmul.mubr.f32.gmra.mxu0 %v324
    %v590 = vpop.f32.mrf.mxu0
    %v591 = vadd.f32 %v521, %v590
    %v592 = vpop.f32.mrf.mxu0
    %593 = vdwg.mxu0
    %594 = vmatprep.subr.mxu0 0.0
    %595 = vmatpush1.msra.mxu0 %v144
    %596 = vmatprep.subr.mxu0 0.0
    %597 = vmatpush1.msra.mxu0 %v143
    %598 = vmatprep.subr.mxu0 0.0
    %599 = vmatpush1.msra.mxu0 %v142
    %600 = vmatprep.subr.mxu0 0.0
    %601 = vmatpush1.msra.mxu0 %v141
    %602 = vmatprep.subr.mxu0 0.0
    %603 = vmatpush1.msra.mxu0 %v140
    %604 = vmatprep.subr.mxu0 0.0
    %605 = vmatpush1.msra.mxu0 %v139
    %606 = vmatprep.subr.mxu0 0.0
    %607 = vmatpush1.msra.mxu0 %v138
    %608 = vmatprep.subr.mxu0 0.0
    %609 = vmatpush1.msra.mxu0 %v137
    %610 = vmatprep.subr.mxu0 0.0
    %611 = vmatpush1.msra.mxu0 %v136
    %612 = vmatprep.subr.mxu0 0.0
    %613 = vmatpush1.msra.mxu0 %v135
    %614 = vmatprep.subr.mxu0 0.0
    %615 = vmatpush1.msra.mxu0 %v134
    %616 = vmatprep.subr.mxu0 0.0
    %617 = vmatpush1.msra.mxu0 %v133
    %618 = vmatprep.subr.mxu0 0.0
    %619 = vmatpush1.msra.mxu0 %v132
    %620 = vmatprep.subr.mxu0 0.0
    %621 = vmatpush1.msra.mxu0 %v131
    %622 = vmatprep.subr.mxu0 0.0
    %623 = vmatpush1.msra.mxu0 %v130
    %624 = vmatprep.subr.mxu0 0.0
    %625 = vmatpush1.msra.mxu0 %v129
    %626 = vmatprep.subr.mxu0 0.0
    %627 = vmatpush2.msra.mxu0 %v160
    %628 = vmatprep.subr.mxu0 0.0
    %629 = vmatpush2.msra.mxu0 %v159
    %630 = vmatprep.subr.mxu0 0.0
    %631 = vmatpush2.msra.mxu0 %v158
    %632 = vmatprep.subr.mxu0 0.0
    %633 = vmatpush2.msra.mxu0 %v157
    %634 = vmatprep.subr.mxu0 0.0
    %635 = vmatpush2.msra.mxu0 %v156
    %636 = vmatprep.subr.mxu0 0.0
    %637 = vmatpush2.msra.mxu0 %v155
    %638 = vmatprep.subr.mxu0 0.0
    %639 = vmatpush2.msra.mxu0 %v154
    %640 = vmatprep.subr.mxu0 0.0
    %641 = vmatpush2.msra.mxu0 %v153
    %642 = vmatprep.subr.mxu0 0.0
    %643 = vmatpush2.msra.mxu0 %v152
    %644 = vmatprep.subr.mxu0 0.0
    %645 = vmatpush2.msra.mxu0 %v151
    %646 = vmatprep.subr.mxu0 0.0
    %647 = vmatpush2.msra.mxu0 %v150
    %648 = vmatprep.subr.mxu0 0.0
    %649 = vmatpush2.msra.mxu0 %v149
    %650 = vmatprep.subr.mxu0 0.0
    %651 = vmatpush2.msra.mxu0 %v148
    %652 = vmatprep.subr.mxu0 0.0
    %653 = vmatpush2.msra.mxu0 %v147
    %654 = vmatprep.subr.mxu0 0.0
    %655 = vmatpush2.msra.mxu0 %v146
    %656 = vmatprep.subr.mxu0 0.0
    %657 = vmatpush2.msra.mxu0 %v145
    %658 = vmatprep.mubr.f32.mxu0 %v333
    %659 = vmatmul.mubr.f32.gmra.mxu0 %v331
    %v660 = vpop.f32.mrf.mxu0
    %v661 = vadd.f32 %v591, %v660
    %v662 = vpop.f32.mrf.mxu0
    %663 = vdwg.mxu0
    %664 = vmatprep.subr.mxu0 0.0
    %665 = vmatpush1.msra.mxu0 %v176
    %666 = vmatprep.subr.mxu0 0.0
    %667 = vmatpush1.msra.mxu0 %v175
    %668 = vmatprep.subr.mxu0 0.0
    %669 = vmatpush1.msra.mxu0 %v174
    %670 = vmatprep.subr.mxu0 0.0
    %671 = vmatpush1.msra.mxu0 %v173
    %672 = vmatprep.subr.mxu0 0.0
    %673 = vmatpush1.msra.mxu0 %v172
    %674 = vmatprep.subr.mxu0 0.0
    %675 = vmatpush1.msra.mxu0 %v171
    %676 = vmatprep.subr.mxu0 0.0
    %677 = vmatpush1.msra.mxu0 %v170
    %678 = vmatprep.subr.mxu0 0.0
    %679 = vmatpush1.msra.mxu0 %v169
    %680 = vmatprep.subr.mxu0 0.0
    %681 = vmatpush1.msra.mxu0 %v168
    %682 = vmatprep.subr.mxu0 0.0
    %683 = vmatpush1.msra.mxu0 %v167
    %684 = vmatprep.subr.mxu0 0.0
    %685 = vmatpush1.msra.mxu0 %v166
    %686 = vmatprep.subr.mxu0 0.0
    %687 = vmatpush1.msra.mxu0 %v165
    %688 = vmatprep.subr.mxu0 0.0
    %689 = vmatpush1.msra.mxu0 %v164
    %690 = vmatprep.subr.mxu0 0.0
    %691 = vmatpush1.msra.mxu0 %v163
    %692 = vmatprep.subr.mxu0 0.0
    %693 = vmatpush1.msra.mxu0 %v162
    %694 = vmatprep.subr.mxu0 0.0
    %695 = vmatpush1.msra.mxu0 %v161
    %696 = vmatprep.subr.mxu0 0.0
    %697 = vmatpush2.msra.mxu0 %v192
    %698 = vmatprep.subr.mxu0 0.0
    %699 = vmatpush2.msra.mxu0 %v191
    %700 = vmatprep.subr.mxu0 0.0
    %701 = vmatpush2.msra.mxu0 %v190
    %702 = vmatprep.subr.mxu0 0.0
    %703 = vmatpush2.msra.mxu0 %v189
    %704 = vmatprep.subr.mxu0 0.0
    %705 = vmatpush2.msra.mxu0 %v188
    %706 = vmatprep.subr.mxu0 0.0
    %707 = vmatpush2.msra.mxu0 %v187
    %708 = vmatprep.subr.mxu0 0.0
    %709 = vmatpush2.msra.mxu0 %v186
    %710 = vmatprep.subr.mxu0 0.0
    %711 = vmatpush2.msra.mxu0 %v185
    %712 = vmatprep.subr.mxu0 0.0
    %713 = vmatpush2.msra.mxu0 %v184
    %714 = vmatprep.subr.mxu0 0.0
    %715 = vmatpush2.msra.mxu0 %v183
    %716 = vmatprep.subr.mxu0 0.0
    %717 = vmatpush2.msra.mxu0 %v182
    %718 = vmatprep.subr.mxu0 0.0
    %719 = vmatpush2.msra.mxu0 %v181
    %720 = vmatprep.subr.mxu0 0.0
    %721 = vmatpush2.msra.mxu0 %v180
    %722 = vmatprep.subr.mxu0 0.0
    %723 = vmatpush2.msra.mxu0 %v179
    %724 = vmatprep.subr.mxu0 0.0
    %725 = vmatpush2.msra.mxu0 %v178
    %726 = vmatprep.subr.mxu0 0.0
    %727 = vmatpush2.msra.mxu0 %v177
    %728 = vmatprep.mubr.f32.mxu0 %v349
    %729 = vmatmul.mubr.f32.gmra.mxu0 %v341
    %v730 = vpop.f32.mrf.mxu0
    %v731 = vadd.f32 %v661, %v730
    %v732 = vpop.f32.mrf.mxu0
    %733 = vdwg.mxu0
    %734 = vmatprep.subr.mxu0 0.0
    %735 = vmatpush1.msra.mxu0 %v208
    %736 = vmatprep.subr.mxu0 0.0
    %737 = vmatpush1.msra.mxu0 %v207
    %738 = vmatprep.subr.mxu0 0.0
    %739 = vmatpush1.msra.mxu0 %v206
    %740 = vmatprep.subr.mxu0 0.0
    %741 = vmatpush1.msra.mxu0 %v205
    %742 = vmatprep.subr.mxu0 0.0
    %743 = vmatpush1.msra.mxu0 %v204
    %744 = vmatprep.subr.mxu0 0.0
    %745 = vmatpush1.msra.mxu0 %v203
    %746 = vmatprep.subr.mxu0 0.0
    %747 = vmatpush1.msra.mxu0 %v202
    %748 = vmatprep.subr.mxu0 0.0
    %749 = vmatpush1.msra.mxu0 %v201
    %750 = vmatprep.subr.mxu0 0.0
    %751 = vmatpush1.msra.mxu0 %v200
    %752 = vmatprep.subr.mxu0 0.0
    %753 = vmatpush1.msra.mxu0 %v199
    %754 = vmatprep.subr.mxu0 0.0
    %755 = vmatpush1.msra.mxu0 %v198
    %756 = vmatprep.subr.mxu0 0.0
    %757 = vmatpush1.msra.mxu0 %v197
    %758 = vmatprep.subr.mxu0 0.0
    %759 = vmatpush1.msra.mxu0 %v196
    %760 = vmatprep.subr.mxu0 0.0
    %761 = vmatpush1.msra.mxu0 %v195
    %762 = vmatprep.subr.mxu0 0.0
    %763 = vmatpush1.msra.mxu0 %v194
    %764 = vmatprep.subr.mxu0 0.0
    %765 = vmatpush1.msra.mxu0 %v193
    %766 = vmatprep.subr.mxu0 0.0
    %767 = vmatpush2.msra.mxu0 %v224
    %768 = vmatprep.subr.mxu0 0.0
    %769 = vmatpush2.msra.mxu0 %v223
    %770 = vmatprep.subr.mxu0 0.0
    %771 = vmatpush2.msra.mxu0 %v222
    %772 = vmatprep.subr.mxu0 0.0
    %773 = vmatpush2.msra.mxu0 %v221
    %774 = vmatprep.subr.mxu0 0.0
    %775 = vmatpush2.msra.mxu0 %v220
    %776 = vmatprep.subr.mxu0 0.0
    %777 = vmatpush2.msra.mxu0 %v219
    %778 = vmatprep.subr.mxu0 0.0
    %779 = vmatpush2.msra.mxu0 %v218
    %780 = vmatprep.subr.mxu0 0.0
    %781 = vmatpush2.msra.mxu0 %v217
    %782 = vmatprep.subr.mxu0 0.0
    %783 = vmatpush2.msra.mxu0 %v216
    %784 = vmatprep.subr.mxu0 0.0
    %785 = vmatpush2.msra.mxu0 %v215
    %786 = vmatprep.subr.mxu0 0.0
    %787 = vmatpush2.msra.mxu0 %v214
    %788 = vmatprep.subr.mxu0 0.0
    %789 = vmatpush2.msra.mxu0 %v213
    %790 = vmatprep.subr.mxu0 0.0
    %791 = vmatpush2.msra.mxu0 %v212
    %792 = vmatprep.subr.mxu0 0.0
    %793 = vmatpush2.msra.mxu0 %v211
    %794 = vmatprep.subr.mxu0 0.0
    %795 = vmatpush2.msra.mxu0 %v210
    %796 = vmatprep.subr.mxu0 0.0
    %797 = vmatpush2.msra.mxu0 %v209
    %798 = vmatprep.mubr.f32.mxu0 %v350
    %799 = vmatmul.mubr.f32.gmra.mxu0 %v348
    %v800 = vpop.f32.mrf.mxu0
    %v801 = vadd.f32 %v731, %v800
    %v802 = vpop.f32.mrf.mxu0
    %803 = vdwg.mxu0
    %804 = vmatprep.subr.mxu0 0.0
    %805 = vmatpush1.msra.mxu0 %v240
    %806 = vmatprep.subr.mxu0 0.0
    %807 = vmatpush1.msra.mxu0 %v239
    %808 = vmatprep.subr.mxu0 0.0
    %809 = vmatpush1.msra.mxu0 %v238
    %810 = vmatprep.subr.mxu0 0.0
    %811 = vmatpush1.msra.mxu0 %v237
    %812 = vmatprep.subr.mxu0 0.0
    %813 = vmatpush1.msra.mxu0 %v236
    %814 = vmatprep.subr.mxu0 0.0
    %815 = vmatpush1.msra.mxu0 %v235
    %816 = vmatprep.subr.mxu0 0.0
    %817 = vmatpush1.msra.mxu0 %v234
    %818 = vmatprep.subr.mxu0 0.0
    %819 = vmatpush1.msra.mxu0 %v233
    %820 = vmatprep.subr.mxu0 0.0
    %821 = vmatpush1.msra.mxu0 %v232
    %822 = vmatprep.subr.mxu0 0.0
    %823 = vmatpush1.msra.mxu0 %v231
    %824 = vmatprep.subr.mxu0 0.0
    %825 = vmatpush1.msra.mxu0 %v230
    %826 = vmatprep.subr.mxu0 0.0
    %827 = vmatpush1.msra.mxu0 %v229
    %828 = vmatprep.subr.mxu0 0.0
    %829 = vmatpush1.msra.mxu0 %v228
    %830 = vmatprep.subr.mxu0 0.0
    %831 = vmatpush1.msra.mxu0 %v227
    %832 = vmatprep.subr.mxu0 0.0
    %833 = vmatpush1.msra.mxu0 %v226
    %834 = vmatprep.subr.mxu0 0.0
    %835 = vmatpush1.msra.mxu0 %v225
    %836 = vmatprep.subr.mxu0 0.0
    %837 = vmatpush2.msra.mxu0 %v256
    %838 = vmatprep.subr.mxu0 0.0
    %839 = vmatpush2.msra.mxu0 %v255
    %840 = vmatprep.subr.mxu0 0.0
    %841 = vmatpush2.msra.mxu0 %v254
    %842 = vmatprep.subr.mxu0 0.0
    %843 = vmatpush2.msra.mxu0 %v253
    %844 = vmatprep.subr.mxu0 0.0
    %845 = vmatpush2.msra.mxu0 %v252
    %846 = vmatprep.subr.mxu0 0.0
    %847 = vmatpush2.msra.mxu0 %v251
    %848 = vmatprep.subr.mxu0 0.0
    %849 = vmatpush2.msra.mxu0 %v250
    %850 = vmatprep.subr.mxu0 0.0
    %851 = vmatpush2.msra.mxu0 %v249
    %852 = vmatprep.subr.mxu0 0.0
    %853 = vmatpush2.msra.mxu0 %v248
    %854 = vmatprep.subr.mxu0 0.0
    %855 = vmatpush2.msra.mxu0 %v247
    %856 = vmatprep.subr.mxu0 0.0
    %857 = vmatpush2.msra.mxu0 %v246
    %858 = vmatprep.subr.mxu0 0.0
    %859 = vmatpush2.msra.mxu0 %v245
    %860 = vmatprep.subr.mxu0 0.0
    %861 = vmatpush2.msra.mxu0 %v244
    %862 = vmatprep.subr.mxu0 0.0
    %863 = vmatpush2.msra.mxu0 %v243
    %864 = vmatprep.subr.mxu0 0.0
    %865 = vmatpush2.msra.mxu0 %v242
    %866 = vmatprep.subr.mxu0 0.0
    %867 = vmatpush2.msra.mxu0 %v241
    %868 = vmatprep.mubr.f32.mxu0 %v366
    %869 = vmatmul.mubr.f32.gmra.mxu0 %v358
    %v870 = vpop.f32.mrf.mxu0
    %v871 = vadd.f32 %v801, %v870
    %v872 = vpop.f32.mrf.mxu0
    %873 = vdwg.mxu0
    %874 = vmatprep.subr.mxu0 0.0
    %875 = vmatpush1.msra.mxu0 %v272
    %876 = vmatprep.subr.mxu0 0.0
    %877 = vmatpush1.msra.mxu0 %v271
    %878 = vmatprep.subr.mxu0 0.0
    %879 = vmatpush1.msra.mxu0 %v270
    %880 = vmatprep.subr.mxu0 0.0
    %881 = vmatpush1.msra.mxu0 %v269
    %882 = vmatprep.subr.mxu0 0.0
    %883 = vmatpush1.msra.mxu0 %v268
    %884 = vmatprep.subr.mxu0 0.0
    %885 = vmatpush1.msra.mxu0 %v267
    %886 = vmatprep.subr.mxu0 0.0
    %887 = vmatpush1.msra.mxu0 %v266
    %888 = vmatprep.subr.mxu0 0.0
    %889 = vmatpush1.msra.mxu0 %v265
    %890 = vmatprep.subr.mxu0 0.0
    %891 = vmatpush1.msra.mxu0 %v264
    %892 = vmatprep.subr.mxu0 0.0
    %893 = vmatpush1.msra.mxu0 %v263
    %894 = vmatprep.subr.mxu0 0.0
    %895 = vmatpush1.msra.mxu0 %v262
    %896 = vmatprep.subr.mxu0 0.0
    %897 = vmatpush1.msra.mxu0 %v261
    %898 = vmatprep.subr.mxu0 0.0
    %899 = vmatpush1.msra.mxu0 %v260
    %900 = vmatprep.subr.mxu0 0.0
    %901 = vmatpush1.msra.mxu0 %v259
    %902 = vmatprep.subr.mxu0 0.0
    %903 = vmatpush1.msra.mxu0 %v258
    %904 = vmatprep.subr.mxu0 0.0
    %905 = vmatpush1.msra.mxu0 %v257
    %906 = vmatprep.subr.mxu0 0.0
    %907 = vmatpush2.msra.mxu0 %v288
    %908 = vmatprep.subr.mxu0 0.0
    %909 = vmatpush2.msra.mxu0 %v287
    %910 = vmatprep.subr.mxu0 0.0
    %911 = vmatpush2.msra.mxu0 %v286
    %912 = vmatprep.subr.mxu0 0.0
    %913 = vmatpush2.msra.mxu0 %v285
    %914 = vmatprep.subr.mxu0 0.0
    %915 = vmatpush2.msra.mxu0 %v284
    %916 = vmatprep.subr.mxu0 0.0
    %917 = vmatpush2.msra.mxu0 %v283
    %918 = vmatprep.subr.mxu0 0.0
    %919 = vmatpush2.msra.mxu0 %v282
    %920 = vmatprep.subr.mxu0 0.0
    %921 = vmatpush2.msra.mxu0 %v281
    %922 = vmatprep.subr.mxu0 0.0
    %923 = vmatpush2.msra.mxu0 %v280
    %924 = vmatprep.subr.mxu0 0.0
    %925 = vmatpush2.msra.mxu0 %v279
    %926 = vmatprep.subr.mxu0 0.0
    %927 = vmatpush2.msra.mxu0 %v278
    %928 = vmatprep.subr.mxu0 0.0
    %929 = vmatpush2.msra.mxu0 %v277
    %930 = vmatprep.subr.mxu0 0.0
    %931 = vmatpush2.msra.mxu0 %v276
    %932 = vmatprep.subr.mxu0 0.0
    %933 = vmatpush2.msra.mxu0 %v275
    %934 = vmatprep.subr.mxu0 0.0
    %935 = vmatpush2.msra.mxu0 %v274
    %936 = vmatprep.subr.mxu0 0.0
    %937 = vmatpush2.msra.mxu0 %v273
    %938 = vmatprep.mubr.f32.mxu0 %v367
    %939 = vmatmul.mubr.f32.gmra.mxu0 %v365
    %v940 = vpop.f32.mrf.mxu0
    %v941 = vadd.f32 %v871, %v940
    %v942 = vpop.f32.mrf.mxu0
    %943 = vdwg.mxu0
    %944 = vst [vmem:[#allocation5] sm:$0x3] %v941
    // Predicated region
    $region18: #{net_linear_forward.1} parent=1 // pred_check
      _
    $region19: #{net_linear_forward.1} parent=1 // pred_check_branch
      %946 = sbr.rel (0) target = $region21
    $region20: #{net_linear_forward.1} parent=1 // pred_region
      %s948 = ssub.s32 32, 32
      %949 = vsyncadd [#allocation4], %s948
      %s951 = sshll.u32 [#allocation5], 4
      %s952 = int_to_ptr.vmem [resolvable:$true] %s951
      %954 = dma.vmem_to_hbm [thread:$0]  %s952, 32, %s3, [#allocation4]
    $region21: #{net_linear_forward.1} parent=1 // pred_fallthru
      _
    // Predicated region
    $region22: #{net_linear_forward.1} parent=1 // pred_check
      _
    $region23: #{net_linear_forward.1} parent=1 // pred_check_branch
      %956 = sbr.rel (0) target = $region25
    $region24: #{net_linear_forward.1} parent=1 // pred_region
      %957 = dma.done [#allocation4], 32
    $region25: #{net_linear_forward.1} parent=1 // pred_fallthru
      _
    %958 = vsyncpa [#allocation3], 1
    %959 = vsyncpa [#allocation4], 1

</llo_original>
